<compile_context>
chip_gen: v7x
topology: tpu7x:2x2x1
jax: 0.10.0
libtpu: 0.0.40
codegen_flags: <defaults>
</compile_context>

<pallas_src>
import jax
import jax.numpy as jnp
from jax.experimental import pallas as pl
from jax.experimental.pallas import tpu as pltpu


# ----------------------------------------------------------------------------
# Generation-dependent VMEM budgets
# ----------------------------------------------------------------------------

def _tpu_vmem_capacity_bytes():
    try:
        info = pltpu.get_tpu_info()
        cap = getattr(info, "vmem_capacity_bytes", None)
        if cap:
            return int(cap)
    except Exception:
        pass
    return 64 * 1024 * 1024                        # conservative: assume v7x


_PHYS_VMEM_BYTES = _tpu_vmem_capacity_bytes()
if _PHYS_VMEM_BYTES >= 96 * 1024 * 1024:           # v5e / v6e: 128 MiB physical
    _VMEM_LIMIT_BYTES = 96 * 1024 * 1024
    _BLOCK_BUDGET_BYTES = 40 * 1024 * 1024
else:                                              # v7x: 64 MiB physical
    _VMEM_LIMIT_BYTES = 32 * 1024 * 1024
    _BLOCK_BUDGET_BYTES = 12 * 1024 * 1024


def _pick_tiles(C, S, M, n_blocked):
    """Pick (cb, mb): coils per block, lane-pixels per block.

    mb: a multiple of 128 dividing M giving >=2 lane blocks when possible
        (keeps both v7x TensorCores busy even when the coil grid collapses
        to a single step); shrunk further if one coil's block would overflow
        the budget.  Falls back to the full M for small / odd sizes.
    cb: largest divisor of C whose double-buffered working set for
        `n_blocked` coil-blocked f32-sized arrays fits the block budget.
    """
    mb = M // 2 if (M % 256 == 0) else M
    while S * mb * 4 * n_blocked * 2 > _BLOCK_BUDGET_BYTES and mb % 256 == 0:
        mb //= 2
    per_coil = S * mb * 4 * n_blocked * 2          # f32 sizing, double-buffered
    cap = max(1, _BLOCK_BUDGET_BYTES // max(per_coil, 1))
    cb = 1
    for d in range(1, C + 1):
        if C % d == 0 and d <= cap:
            cb = d
    return cb, mb


# ----------------------------------------------------------------------------
# Pallas kernels (lane/sublane-dense (cb, 8, mb) coil blocks, (8, mb) planes)
# ----------------------------------------------------------------------------

def coil_expand_kernel(xr_ref, xi_ref, sr_ref, si_ref, er_ref, ei_ref):
    """out[c] = smaps[c] * x   (complex multiply, x broadcast over coil block)."""
    xr = xr_ref[...]                               # (S, mb) f32
    xi = xi_ref[...]
    sr = sr_ref[...].astype(jnp.float32)           # (cb, S, mb)
    si = si_ref[...].astype(jnp.float32)
    er_ref[...] = sr * xr - si * xi
    ei_ref[...] = sr * xi + si * xr


def coil_combine_kernel(xdcr_ref, xdci_ref, sr_ref, si_ref, cr_ref, ci_ref,
                        rr_ref, ri_ref):
    """Accumulate sum_c conj(smaps[c]) * img[c] into the resident output block;
    the accumulator is initialised with the precomputed data-consistency term."""
    @pl.when(pl.program_id(1) == 0)
    def _():
        rr_ref[...] = xdcr_ref[...]
        ri_ref[...] = xdci_ref[...]
    sr = sr_ref[...].astype(jnp.float32)           # (cb, S, mb)
    si = si_ref[...].astype(jnp.float32)
    cr = cr_ref[...]
    ci = ci_ref[...]
    # conj(s) * z = (sr - i*si) * (cr + i*ci)
    rr_ref[...] += jnp.sum(sr * cr + si * ci, axis=0)
    ri_ref[...] += jnp.sum(sr * ci - si * cr, axis=0)


# ----------------------------------------------------------------------------
# pallas_call wrappers
# ----------------------------------------------------------------------------

def coil_expand(xr, xi, sr, si):
    C, S, M = sr.shape
    cb, mb = _pick_tiles(C, S, M, n_blocked=4)     # sr, si, er, ei
    coil_blk = pl.BlockSpec((cb, S, mb), lambda ci, mi: (ci, 0, mi))
    img_blk = pl.BlockSpec((S, mb), lambda ci, mi: (0, mi))
    return pl.pallas_call(
        coil_expand_kernel,
        out_shape=(jax.ShapeDtypeStruct((C, S, M), jnp.float32),
                   jax.ShapeDtypeStruct((C, S, M), jnp.float32)),
        grid=(C // cb, M // mb),
        in_specs=[img_blk, img_blk, coil_blk, coil_blk],
        out_specs=(coil_blk, coil_blk),
        compiler_params=pltpu.CompilerParams(
            dimension_semantics=("parallel", "parallel"),
            vmem_limit_bytes=_VMEM_LIMIT_BYTES),
    )(xr, xi, sr, si)


def coil_combine(xdcr, xdci, sr, si, cr, ci):
    C, S, M = sr.shape
    cb, mb = _pick_tiles(C, S, M, n_blocked=4)     # sr, si, cr, ci
    coil_blk = pl.BlockSpec((cb, S, mb), lambda mi, ki: (ki, 0, mi))
    pix_blk = pl.BlockSpec((S, mb), lambda mi, ki: (0, mi))
    return pl.pallas_call(
        coil_combine_kernel,
        out_shape=(jax.ShapeDtypeStruct((S, M), jnp.float32),
                   jax.ShapeDtypeStruct((S, M), jnp.float32)),
        grid=(M // mb, C // cb),                   # reduction (coil) axis last
        in_specs=[pix_blk, pix_blk, coil_blk, coil_blk, coil_blk, coil_blk],
        out_specs=(pix_blk, pix_blk),
        compiler_params=pltpu.CompilerParams(
            dimension_semantics=("parallel", "arbitrary"),
            vmem_limit_bytes=_VMEM_LIMIT_BYTES),
    )(xdcr, xdci, sr, si, cr, ci)


# ----------------------------------------------------------------------------
# glue (wavelet placeholder, hoisted constant prep, FFT)
# ----------------------------------------------------------------------------

def complex_to_channels(z):
    return jnp.stack([jnp.real(z), jnp.imag(z)], axis=-3)


def channels_to_complex(c):
    return (c[..., 0, :, :] + 1j * c[..., 1, :, :]).astype(jnp.complex64)


def wavelet_inverse_identity(ch, levels):
    # TODO(synk): WaveletTransform.inverse is an external module not provided
    # with prox_block; using identity in its place.
    del levels
    return ch


def prepare_prox_consts(smaps, mask, b, corner_origin=False,
                        storage_dtype=jnp.bfloat16):
    """One-time (hoisted) preparation of per-recon constants.

    All centered-FFT shift handling is folded into the constants (ifftshift of
    smaps/mask once), and the measured-data term of the data-consistency step
    is precomputed:  x_dc = sum_c conj(S'_c) * IFFT(m' * b'_c)  (un-centered
    frame), so the per-call path never touches b or the mask coil-planes.
    """
    _, H, W, C = smaps.shape
    axes = (0, 1)
    N = H * W
    S = 8 if N % 8 == 0 else 1
    M = N // S

    sm = smaps[0]                                          # (H, W, C) complex
    bb = jnp.fft.ifftshift(b[0, 0], axes=axes)             # (H, W, C)
    mk = (jnp.fft.ifftshift(mask, axes=axes) != 0)         # (H, W) bool, un-centered
    if not corner_origin:
        sm = jnp.fft.ifftshift(sm, axes=axes)

    # Precomputed data-consistency term (full precision, un-centered frame).
    kdc = jnp.where(mk[..., None], bb, jnp.zeros_like(bb))
    xdc = jnp.sum(jnp.conj(sm) * jnp.fft.ifftn(kdc, axes=axes, norm="ortho"),
                  axis=-1)                                 # (H, W) complex

    sm = jnp.transpose(sm, (2, 0, 1)).reshape(C, S, M)     # coil-major, dense
    return dict(
        sr=jnp.real(sm).astype(storage_dtype),
        si=jnp.imag(sm).astype(storage_dtype),
        xdcr=jnp.real(xdc).astype(jnp.float32).reshape(S, M),
        xdci=jnp.imag(xdc).astype(jnp.float32).reshape(S, M),
        keep=(1.0 - mk.astype(jnp.float32)),               # (H, W): 1 - mask
        H=H, W=W, C=C, S=S, corner_origin=corner_origin,
    )


def prox_block_apply(x, consts, wav_levels=2):
    """Per-call proximal / data-consistency step.  x: (1,1,H,W) complex64."""
    H, W, C, S = consts["H"], consts["W"], consts["C"], consts["S"]
    corner = consts["corner_origin"]
    N = H * W
    M = N // S
    axes = (0, 1)

    # squeeze + (identity) inverse wavelet transform
    img = jnp.squeeze(x, 1)                                # (1, H, W)
    ch = complex_to_channels(img)
    ch = wavelet_inverse_identity(ch, wav_levels)
    img = channels_to_complex(ch)[0]                       # (H, W)

    if not corner:
        img = jnp.fft.ifftshift(img, axes=axes)            # tiny (H,W)-only shift

    xr = jnp.real(img).astype(jnp.float32).reshape(S, M)
    xi = jnp.imag(img).astype(jnp.float32).reshape(S, M)

    # Pallas: per-coil sensitivity-map multiply (coil x lane-pixel grid)
    er, ei = coil_expand(xr, xi, consts["sr"], consts["si"])
    coil_imgs = jax.lax.complex(er, ei).reshape(C, H, W)

    # glue: orthonormal FFT, zero the measured k-space locations ((1-m) scale,
    # a single fused complex*real multiply), orthonormal inverse FFT.
    ksp = jnp.fft.fftn(coil_imgs, axes=(1, 2), norm="ortho")
    ksp = ksp * consts["keep"]
    back = jnp.fft.ifftn(ksp, axes=(1, 2), norm="ortho")

    # Pallas: coil combine  sum_c conj(S_c)*back_c + x_dc  (accumulated in-kernel)
    rr, ri = coil_combine(consts["xdcr"], consts["xdci"],
                          consts["sr"], consts["si"],
                          jnp.real(back).astype(jnp.float32).reshape(C, S, M),
                          jnp.imag(back).astype(jnp.float32).reshape(C, S, M))
    out = jax.lax.complex(rr, ri).reshape(H, W)
    if not corner:
        out = jnp.fft.fftshift(out, axes=axes)             # tiny (H,W)-only shift
    return out[None, None].astype(jnp.complex64)           # (1, 1, H, W)


def prox_block_forward(x, mask, b, smaps, corner_origin=False, wav_levels=2,
                       consts=None, storage_dtype=jnp.bfloat16):
    """Drop-in interface; pass `consts` (from prepare_prox_consts) to hoist the
    one-time smaps/mask/b preparation out of an unrolled iterative recon."""
    if consts is None:
        consts = prepare_prox_consts(smaps, mask, b, corner_origin,
                                     storage_dtype=storage_dtype)
    return prox_block_apply(x, consts, wav_levels=wav_levels)


# ----------------------------------------------------------------------------
# pure-JAX reference (mirrors the PyTorch module) for verification
# ----------------------------------------------------------------------------

def prox_block_reference(x, mask, b, smaps, corner_origin=False):
    img = x[0, 0]                                          # (H, W)
    sm = smaps[0]                                          # (H, W, C)
    out = sm * img[:, :, None]
    axes = (0, 1)
    if corner_origin:
        out = jnp.fft.fftshift(jnp.fft.fftn(out, axes=axes, norm="ortho"),
                               axes=axes)
    else:
        out = jnp.fft.fftshift(
            jnp.fft.fftn(jnp.fft.ifftshift(out, axes=axes),
                         axes=axes, norm="ortho"), axes=axes)
    out = jnp.where(mask[:, :, None], b[0, 0], out)
    if corner_origin:
        out = jnp.fft.ifftn(jnp.fft.ifftshift(out, axes=axes),
                            axes=axes, norm="ortho")
    else:
        out = jnp.fft.fftshift(
            jnp.fft.ifftn(jnp.fft.ifftshift(out, axes=axes),
                          axes=axes, norm="ortho"), axes=axes)
    out = jnp.sum(jnp.conj(sm) * out, axis=-1)
    return out[None, None]


# ----------------------------------------------------------------------------
if __name__ == "__main__":
    H, W, C = 16, 16, 4
    key = jax.random.PRNGKey(0)
    k1, k2, k3, k4, k5, k6 = jax.random.split(key, 6)

    smaps = (jax.random.normal(k1, (1, H, W, C), jnp.float32)
             + 1j * jax.random.normal(k2, (1, H, W, C), jnp.float32)
             ).astype(jnp.complex64)
    x = (jax.random.normal(k3, (1, 1, H, W), jnp.float32)
         + 1j * jax.random.normal(k4, (1, 1, H, W), jnp.float32)
         ).astype(jnp.complex64)
    b = (jax.random.normal(k5, (1, 1, H, W, C), jnp.float32)
         + 1j * jax.random.normal(k6, (1, 1, H, W, C), jnp.float32)
         ).astype(jnp.complex64)
    mask = jax.random.bernoulli(jax.random.PRNGKey(7), 0.4, (H, W))

    ok = True
    for corner in (False, True):
        ref = jax.block_until_ready(
            prox_block_reference(x, mask, b, smaps, corner_origin=corner))
        # exact-parity f32 storage path, and the default bf16 smaps-storage path
        for sd, rtol, atol in ((jnp.float32, 2e-3, 2e-3),
                               (jnp.bfloat16, 5e-2, 1e-1)):
            consts = prepare_prox_consts(smaps, mask, b, corner_origin=corner,
                                         storage_dtype=sd)
            fwd = jax.jit(lambda xx, c=consts: prox_block_apply(xx, c))
            out = jax.block_until_ready(fwd(x))
            assert out.shape == (1, 1, H, W)
            ok = ok and bool(jnp.allclose(out, ref, rtol=rtol, atol=atol))
    assert ok
    print("KERNEL_OK")
</pallas_src>

<mosaic_0001>
module attributes {stable_mosaic.version = 11 : i64} {
  func.func @coil_expand_kernel(%arg0: i32, %arg1: i32, %arg2: memref<8x32xf32, #tpu.memory_space<vmem>>, %arg3: memref<8x32xf32, #tpu.memory_space<vmem>>, %arg4: memref<4x8x32xf32, #tpu.memory_space<vmem>>, %arg5: memref<4x8x32xf32, #tpu.memory_space<vmem>>, %arg6: memref<4x8x32xf32, #tpu.memory_space<vmem>>, %arg7: memref<4x8x32xf32, #tpu.memory_space<vmem>>) attributes {dimension_semantics = [#tpu.dimension_semantics<parallel>, #tpu.dimension_semantics<parallel>], iteration_bounds = array<i64: 1, 1>, scalar_prefetch = 0 : i64, scratch_operands = 0 : i64, tpu.core_type = #tpu.core_type<tc>, window_params = [{transform_indices = @transform_0, window_bounds = array<i64: 8, 32>}, {transform_indices = @transform_1, window_bounds = array<i64: 8, 32>}, {transform_indices = @transform_2, window_bounds = array<i64: 4, 8, 32>}, {transform_indices = @transform_3, window_bounds = array<i64: 4, 8, 32>}, {transform_indices = @transform_4, window_bounds = array<i64: 4, 8, 32>}, {transform_indices = @transform_5, window_bounds = array<i64: 4, 8, 32>}]} {
    %c0 = arith.constant 0 : index
    %c0_0 = arith.constant 0 : index
    %0 = vector.load %arg2[%c0, %c0_0] : memref<8x32xf32, #tpu.memory_space<vmem>>, vector<8x32xf32>
    %c0_1 = arith.constant 0 : index
    %c0_2 = arith.constant 0 : index
    %1 = vector.load %arg3[%c0_1, %c0_2] : memref<8x32xf32, #tpu.memory_space<vmem>>, vector<8x32xf32>
    %c0_3 = arith.constant 0 : index
    %c0_4 = arith.constant 0 : index
    %c0_5 = arith.constant 0 : index
    %2 = vector.load %arg4[%c0_3, %c0_4, %c0_5] : memref<4x8x32xf32, #tpu.memory_space<vmem>>, vector<4x8x32xf32>
    %c0_6 = arith.constant 0 : index
    %c0_7 = arith.constant 0 : index
    %c0_8 = arith.constant 0 : index
    %3 = vector.load %arg5[%c0_6, %c0_7, %c0_8] : memref<4x8x32xf32, #tpu.memory_space<vmem>>, vector<4x8x32xf32>
    %4 = vector.shape_cast %0 : vector<8x32xf32> to vector<1x8x32xf32>
    %5 = vector.broadcast %4 : vector<1x8x32xf32> to vector<4x8x32xf32>
    %6 = arith.mulf %2, %5 : vector<4x8x32xf32>
    %7 = vector.shape_cast %1 : vector<8x32xf32> to vector<1x8x32xf32>
    %8 = vector.broadcast %7 : vector<1x8x32xf32> to vector<4x8x32xf32>
    %9 = arith.mulf %3, %8 : vector<4x8x32xf32>
    %10 = arith.subf %6, %9 : vector<4x8x32xf32>
    %c0_9 = arith.constant 0 : index
    %c0_10 = arith.constant 0 : index
    %c0_11 = arith.constant 0 : index
    %11 = vector.load %arg6[%c0_9, %c0_10, %c0_11] : memref<4x8x32xf32, #tpu.memory_space<vmem>>, vector<4x8x32xf32>
    tpu.vector_store %arg6[%c0_9, %c0_10, %c0_11], %10 {strides = array<i32>} : memref<4x8x32xf32, #tpu.memory_space<vmem>>, vector<4x8x32xf32>,
    %12 = vector.shape_cast %1 : vector<8x32xf32> to vector<1x8x32xf32>
    %13 = vector.broadcast %12 : vector<1x8x32xf32> to vector<4x8x32xf32>
    %14 = arith.mulf %2, %13 : vector<4x8x32xf32>
    %15 = vector.shape_cast %0 : vector<8x32xf32> to vector<1x8x32xf32>
    %16 = vector.broadcast %15 : vector<1x8x32xf32> to vector<4x8x32xf32>
    %17 = arith.mulf %3, %16 : vector<4x8x32xf32>
    %18 = arith.addf %14, %17 : vector<4x8x32xf32>
    %c0_12 = arith.constant 0 : index
    %c0_13 = arith.constant 0 : index
    %c0_14 = arith.constant 0 : index
    %19 = vector.load %arg7[%c0_12, %c0_13, %c0_14] : memref<4x8x32xf32, #tpu.memory_space<vmem>>, vector<4x8x32xf32>
    tpu.vector_store %arg7[%c0_12, %c0_13, %c0_14], %18 {strides = array<i32>} : memref<4x8x32xf32, #tpu.memory_space<vmem>>, vector<4x8x32xf32>,
    return
  }
  func.func @transform_0(%arg0: i32, %arg1: i32) -> (i32, i32) {
    %c0_i32 = arith.constant 0 : i32
    %c0_i32_0 = arith.constant 0 : i32
    return %c0_i32, %arg1 : i32, i32
  }
  func.func @transform_1(%arg0: i32, %arg1: i32) -> (i32, i32) {
    %c0_i32 = arith.constant 0 : i32
    %c0_i32_0 = arith.constant 0 : i32
    return %c0_i32, %arg1 : i32, i32
  }
  func.func @transform_2(%arg0: i32, %arg1: i32) -> (i32, i32, i32) {
    %c0_i32 = arith.constant 0 : i32
    %c0_i32_0 = arith.constant 0 : i32
    return %arg0, %c0_i32, %arg1 : i32, i32, i32
  }
  func.func @transform_3(%arg0: i32, %arg1: i32) -> (i32, i32, i32) {
    %c0_i32 = arith.constant 0 : i32
    %c0_i32_0 = arith.constant 0 : i32
    return %arg0, %c0_i32, %arg1 : i32, i32, i32
  }
  func.func @transform_4(%arg0: i32, %arg1: i32) -> (i32, i32, i32) {
    %c0_i32 = arith.constant 0 : i32
    %c0_i32_0 = arith.constant 0 : i32
    return %arg0, %c0_i32, %arg1 : i32, i32, i32
  }
  func.func @transform_5(%arg0: i32, %arg1: i32) -> (i32, i32, i32) {
    %c0_i32 = arith.constant 0 : i32
    %c0_i32_0 = arith.constant 0 : i32
    return %arg0, %c0_i32, %arg1 : i32, i32, i32
  }
}

module attributes {stable_mosaic.version = 11 : i64} {
  func.func @coil_combine_kernel(%arg0: i32, %arg1: i32, %arg2: memref<8x32xf32, #tpu.memory_space<vmem>>, %arg3: memref<8x32xf32, #tpu.memory_space<vmem>>, %arg4: memref<4x8x32xf32, #tpu.memory_space<vmem>>, %arg5: memref<4x8x32xf32, #tpu.memory_space<vmem>>, %arg6: memref<4x8x32xf32, #tpu.memory_space<vmem>>, %arg7: memref<4x8x32xf32, #tpu.memory_space<vmem>>, %arg8: memref<8x32xf32, #tpu.memory_space<vmem>>, %arg9: memref<8x32xf32, #tpu.memory_space<vmem>>) attributes {dimension_semantics = [#tpu.dimension_semantics<parallel>, #tpu.dimension_semantics<arbitrary>], iteration_bounds = array<i64: 1, 1>, scalar_prefetch = 0 : i64, scratch_operands = 0 : i64, tpu.core_type = #tpu.core_type<tc>, window_params = [{transform_indices = @transform_0, window_bounds = array<i64: 8, 32>}, {transform_indices = @transform_1, window_bounds = array<i64: 8, 32>}, {transform_indices = @transform_2, window_bounds = array<i64: 4, 8, 32>}, {transform_indices = @transform_3, window_bounds = array<i64: 4, 8, 32>}, {transform_indices = @transform_4, window_bounds = array<i64: 4, 8, 32>}, {transform_indices = @transform_5, window_bounds = array<i64: 4, 8, 32>}, {transform_indices = @transform_6, window_bounds = array<i64: 8, 32>}, {transform_indices = @transform_7, window_bounds = array<i64: 8, 32>}]} {
    %c0_i32 = arith.constant 0 : i32
    %0 = arith.cmpi eq, %arg1, %c0_i32 : i32
    %1 = arith.extui %0 : i1 to i32
    %c0_i32_0 = arith.constant 0 : i32
    %2 = arith.cmpi ne, %1, %c0_i32_0 : i32
    scf.if %2 {
      %c0_21 = arith.constant 0 : index
      %c0_22 = arith.constant 0 : index
      %21 = vector.load %arg2[%c0_21, %c0_22] : memref<8x32xf32, #tpu.memory_space<vmem>>, vector<8x32xf32>
      %c0_23 = arith.constant 0 : index
      %c0_24 = arith.constant 0 : index
      %22 = vector.load %arg8[%c0_23, %c0_24] : memref<8x32xf32, #tpu.memory_space<vmem>>, vector<8x32xf32>
      tpu.vector_store %arg8[%c0_23, %c0_24], %21 {strides = array<i32>} : memref<8x32xf32, #tpu.memory_space<vmem>>, vector<8x32xf32>,
      %c0_25 = arith.constant 0 : index
      %c0_26 = arith.constant 0 : index
      %23 = vector.load %arg3[%c0_25, %c0_26] : memref<8x32xf32, #tpu.memory_space<vmem>>, vector<8x32xf32>
      %c0_27 = arith.constant 0 : index
      %c0_28 = arith.constant 0 : index
      %24 = vector.load %arg9[%c0_27, %c0_28] : memref<8x32xf32, #tpu.memory_space<vmem>>, vector<8x32xf32>
      tpu.vector_store %arg9[%c0_27, %c0_28], %23 {strides = array<i32>} : memref<8x32xf32, #tpu.memory_space<vmem>>, vector<8x32xf32>,
    } else {
    }
    %c0 = arith.constant 0 : index
    %c0_1 = arith.constant 0 : index
    %c0_2 = arith.constant 0 : index
    %3 = vector.load %arg4[%c0, %c0_1, %c0_2] : memref<4x8x32xf32, #tpu.memory_space<vmem>>, vector<4x8x32xf32>
    %c0_3 = arith.constant 0 : index
    %c0_4 = arith.constant 0 : index
    %c0_5 = arith.constant 0 : index
    %4 = vector.load %arg5[%c0_3, %c0_4, %c0_5] : memref<4x8x32xf32, #tpu.memory_space<vmem>>, vector<4x8x32xf32>
    %c0_6 = arith.constant 0 : index
    %c0_7 = arith.constant 0 : index
    %c0_8 = arith.constant 0 : index
    %5 = vector.load %arg6[%c0_6, %c0_7, %c0_8] : memref<4x8x32xf32, #tpu.memory_space<vmem>>, vector<4x8x32xf32>
    %c0_9 = arith.constant 0 : index
    %c0_10 = arith.constant 0 : index
    %c0_11 = arith.constant 0 : index
    %6 = vector.load %arg7[%c0_9, %c0_10, %c0_11] : memref<4x8x32xf32, #tpu.memory_space<vmem>>, vector<4x8x32xf32>
    %c0_12 = arith.constant 0 : index
    %c0_13 = arith.constant 0 : index
    %7 = vector.load %arg8[%c0_12, %c0_13] : memref<8x32xf32, #tpu.memory_space<vmem>>, vector<8x32xf32>
    %8 = arith.mulf %3, %5 : vector<4x8x32xf32>
    %9 = arith.mulf %4, %6 : vector<4x8x32xf32>
    %10 = arith.addf %8, %9 : vector<4x8x32xf32>
    %cst = arith.constant dense<0.000000e+00> : vector<8x32xf32>
    %11 = vector.multi_reduction <add>, %10, %cst [0] : vector<4x8x32xf32> to vector<8x32xf32>
    %12 = arith.addf %7, %11 : vector<8x32xf32>
    %c0_14 = arith.constant 0 : index
    %c0_15 = arith.constant 0 : index
    %13 = vector.load %arg8[%c0_14, %c0_15] : memref<8x32xf32, #tpu.memory_space<vmem>>, vector<8x32xf32>
    tpu.vector_store %arg8[%c0_14, %c0_15], %12 {strides = array<i32>} : memref<8x32xf32, #tpu.memory_space<vmem>>, vector<8x32xf32>,
    %c0_16 = arith.constant 0 : index
    %c0_17 = arith.constant 0 : index
    %14 = vector.load %arg9[%c0_16, %c0_17] : memref<8x32xf32, #tpu.memory_space<vmem>>, vector<8x32xf32>
    %15 = arith.mulf %3, %6 : vector<4x8x32xf32>
    %16 = arith.mulf %4, %5 : vector<4x8x32xf32>
    %17 = arith.subf %15, %16 : vector<4x8x32xf32>
    %cst_18 = arith.constant dense<0.000000e+00> : vector<8x32xf32>
    %18 = vector.multi_reduction <add>, %17, %cst_18 [0] : vector<4x8x32xf32> to vector<8x32xf32>
    %19 = arith.addf %14, %18 : vector<8x32xf32>
    %c0_19 = arith.constant 0 : index
    %c0_20 = arith.constant 0 : index
    %20 = vector.load %arg9[%c0_19, %c0_20] : memref<8x32xf32, #tpu.memory_space<vmem>>, vector<8x32xf32>
    tpu.vector_store %arg9[%c0_19, %c0_20], %19 {strides = array<i32>} : memref<8x32xf32, #tpu.memory_space<vmem>>, vector<8x32xf32>,
    return
  }
  func.func @transform_0(%arg0: i32, %arg1: i32) -> (i32, i32) {
    %c0_i32 = arith.constant 0 : i32
    %c0_i32_0 = arith.constant 0 : i32
    return %c0_i32, %arg0 : i32, i32
  }
  func.func @transform_1(%arg0: i32, %arg1: i32) -> (i32, i32) {
    %c0_i32 = arith.constant 0 : i32
    %c0_i32_0 = arith.constant 0 : i32
    return %c0_i32, %arg0 : i32, i32
  }
  func.func @transform_2(%arg0: i32, %arg1: i32) -> (i32, i32, i32) {
    %c0_i32 = arith.constant 0 : i32
    %c0_i32_0 = arith.constant 0 : i32
    return %arg1, %c0_i32, %arg0 : i32, i32, i32
  }
  func.func @transform_3(%arg0: i32, %arg1: i32) -> (i32, i32, i32) {
    %c0_i32 = arith.constant 0 : i32
    %c0_i32_0 = arith.constant 0 : i32
    return %arg1, %c0_i32, %arg0 : i32, i32, i32
  }
  func.func @transform_4(%arg0: i32, %arg1: i32) -> (i32, i32, i32) {
    %c0_i32 = arith.constant 0 : i32
    %c0_i32_0 = arith.constant 0 : i32
    return %arg1, %c0_i32, %arg0 : i32, i32, i32
  }
  func.func @transform_5(%arg0: i32, %arg1: i32) -> (i32, i32, i32) {
    %c0_i32 = arith.constant 0 : i32
    %c0_i32_0 = arith.constant 0 : i32
    return %arg1, %c0_i32, %arg0 : i32, i32, i32
  }
  func.func @transform_6(%arg0: i32, %arg1: i32) -> (i32, i32) {
    %c0_i32 = arith.constant 0 : i32
    %c0_i32_0 = arith.constant 0 : i32
    return %c0_i32, %arg0 : i32, i32
  }
  func.func @transform_7(%arg0: i32, %arg1: i32) -> (i32, i32) {
    %c0_i32 = arith.constant 0 : i32
    %c0_i32_0 = arith.constant 0 : i32
    return %c0_i32, %arg0 : i32, i32
  }
}

</mosaic_0001>

<llo_original>
// kernel: custom-call
$region0: #{custom-call}
  %s0 = inlined_call_operand.hbm [shape: c64[1,1,16,16], index: 0, kind: input, shape index: {}]
  %s1 = inlined_call_operand.vmem [shape: f32[1,1,16,16], index: 1, kind: output, shape index: {}]
  $region1: #{custom-call} parent=0
    #allocation0 [shape = 's32[1]{0}', space=sflag, size = 0x4, scoped, tag = 'scoped memory for custom-call']
    %2 = vsyncpa [#allocation0], 0
    %s3 = sshll.u32 %s1, 4
    %s4 = int_to_ptr.vmem [resolvable:$true] %s3
    %6 = dma.hbm_to_vmem [thread:$0]  %s0, 256, %s4, [#allocation0]
    %7 = dma.done [#allocation0], 256
    %8 = vsyncpa [#allocation0], 1

// kernel: custom-call.1
$region0: #{custom-call.1}
  %s0 = inlined_call_operand.hbm [shape: c64[1,1,16,16], index: 0, kind: input, shape index: {}]
  %s1 = inlined_call_operand.vmem [shape: f32[1,1,16,16], index: 1, kind: output, shape index: {}]
  %s2 = scalar_lea.hbm %s0, 256
  $region1: #{custom-call.1} parent=0
    #allocation0 [shape = 's32[1]{0}', space=sflag, size = 0x4, scoped, tag = 'scoped memory for custom-call.1']
    %3 = vsyncpa [#allocation0], 0
    %s4 = sshll.u32 %s1, 4
    %s5 = int_to_ptr.vmem [resolvable:$true] %s4
    %7 = dma.hbm_to_vmem [thread:$0]  %s2, 256, %s5, [#allocation0]
    %8 = dma.done [#allocation0], 256
    %9 = vsyncpa [#allocation0], 1

// kernel: _lambda_.2
$region0: #{_lambda_.2}
  #allocation0 [shape = 'u32[]', space=smem, size = 0x4, offset = 0x4, fixed_abs, tag = 'smem constant byte address 0x4 - core index']
  #allocation1 [shape = 'u32[144,128]{1,0:T(1,128)}', space=vmem, size = 0x12000, scoped, tag = 'internal scratch']
  %s0 = inlined_call_operand.vmem [shape: f32[8,32], index: 0, kind: input, shape index: {}]
  %s1 = inlined_call_operand.vmem [shape: f32[8,32], index: 1, kind: input, shape index: {}]
  %s2 = inlined_call_operand.vmem [shape: f32[4,8,32], index: 2, kind: input, shape index: {}]
  %s3 = inlined_call_operand.vmem [shape: f32[4,8,32], index: 3, kind: input, shape index: {}]
  %s4 = inlined_call_operand.vmem [shape: f32[4,8,32], index: 4, kind: output, shape index: {0}]
  %s5 = inlined_call_operand.vmem [shape: f32[4,8,32], index: 5, kind: output, shape index: {1}]
  %6 = xla_tuple %s4, %s5
  %s7 = sld [smem:[#allocation0]]
  $region34: #{_lambda_.2} parent=0
    _
  %s9 = ssub.s32 1, %s7
  %s10 = scalar_select 0, %s9, %s7
  // Predicated region
  $region2: #{_lambda_.2} parent=0 // pred_check
    _
  $region3: #{_lambda_.2} parent=0 // pred_check_branch
    %12 = sbr.rel (0) target = $region5
  $region4: #{_lambda_.2} parent=0 // pred_region
    _
  $region5: #{_lambda_.2} parent=0 // pred_fallthru
    _
  // Predicated region
  $region6: #{_lambda_.2} parent=0 // pred_check
    _
  $region7: #{_lambda_.2} parent=0 // pred_check_branch
    %14 = sbr.rel (0) target = $region9
  $region8: #{_lambda_.2} parent=0 // pred_region
    _
  $region9: #{_lambda_.2} parent=0 // pred_fallthru
    _
  // Predicated region
  $region10: #{_lambda_.2} parent=0 // pred_check
    _
  $region11: #{_lambda_.2} parent=0 // pred_check_branch
    %16 = sbr.rel (0) target = $region13
  $region12: #{_lambda_.2} parent=0 // pred_region
    _
  $region13: #{_lambda_.2} parent=0 // pred_fallthru
    _
  // Predicated region
  $region14: #{_lambda_.2} parent=0 // pred_check
    _
  $region15: #{_lambda_.2} parent=0 // pred_check_branch
    %18 = sbr.rel (0) target = $region17
  $region16: #{_lambda_.2} parent=0 // pred_region
    _
  $region17: #{_lambda_.2} parent=0 // pred_fallthru
    _
  %v19 = vld [vmem:[%s0] sm:$0xff]
  %v20 = vld [vmem:[%s1] sm:$0xff]
  %v21 = vld [vmem:[%s2] sm:$0xff]
  %v22 = vld [vmem:[%s2 + $0x8] sm:$0xff]
  %v23 = vld [vmem:[%s2 + $0x10] sm:$0xff]
  %v24 = vld [vmem:[%s2 + $0x18] sm:$0xff]
  %v25 = vld [vmem:[%s3] sm:$0xff]
  %v26 = vld [vmem:[%s3 + $0x8] sm:$0xff]
  %v27 = vld [vmem:[%s3 + $0x10] sm:$0xff]
  %v28 = vld [vmem:[%s3 + $0x18] sm:$0xff]
  %v29 = vmul.f32 %v21, %v19
  %v30 = vmul.f32 %v22, %v19
  %v31 = vmul.f32 %v23, %v19
  %v32 = vmul.f32 %v24, %v19
  %v33 = vmul.f32 %v25, %v20
  %v34 = vmul.f32 %v26, %v20
  %v35 = vmul.f32 %v27, %v20
  %v36 = vmul.f32 %v28, %v20
  %v37 = vsub.f32 %v29, %v33
  %v38 = vsub.f32 %v30, %v34
  %v39 = vsub.f32 %v31, %v35
  %v40 = vsub.f32 %v32, %v36
  %vm41 = vcmask 261120
  %42 = vst.msk [vmem:[%s4] sm:$0xff] %vm41, %v37
  %43 = vst.msk [vmem:[%s4 + $0x8] sm:$0xff] %vm41, %v38
  %44 = vst.msk [vmem:[%s4 + $0x10] sm:$0xff] %vm41, %v39
  %45 = vst.msk [vmem:[%s4 + $0x18] sm:$0xff] %vm41, %v40
  %v46 = vmul.f32 %v21, %v20
  %v47 = vmul.f32 %v22, %v20
  %v48 = vmul.f32 %v23, %v20
  %v49 = vmul.f32 %v24, %v20
  %v50 = vmul.f32 %v25, %v19
  %v51 = vmul.f32 %v26, %v19
  %v52 = vmul.f32 %v27, %v19
  %v53 = vmul.f32 %v28, %v19
  %v54 = vadd.f32 %v46, %v50
  %v55 = vadd.f32 %v47, %v51
  %v56 = vadd.f32 %v48, %v52
  %v57 = vadd.f32 %v49, %v53
  %58 = vst.msk [vmem:[%s5] sm:$0xff] %vm41, %v54
  %59 = vst.msk [vmem:[%s5 + $0x8] sm:$0xff] %vm41, %v55
  %60 = vst.msk [vmem:[%s5 + $0x10] sm:$0xff] %vm41, %v56
  %61 = vst.msk [vmem:[%s5 + $0x18] sm:$0xff] %vm41, %v57
  // Predicated region
  $region18: #{_lambda_.2} parent=0 // pred_check
    _
  $region19: #{_lambda_.2} parent=0 // pred_check_branch
    %63 = sbr.rel (0) target = $region21
  $region20: #{_lambda_.2} parent=0 // pred_region
    _
  $region21: #{_lambda_.2} parent=0 // pred_fallthru
    _
  // Predicated region
  $region22: #{_lambda_.2} parent=0 // pred_check
    _
  $region23: #{_lambda_.2} parent=0 // pred_check_branch
    %65 = sbr.rel (0) target = $region25
  $region24: #{_lambda_.2} parent=0 // pred_region
    _
  $region25: #{_lambda_.2} parent=0 // pred_fallthru
    _
  // Predicated region
  $region26: #{_lambda_.2} parent=0 // pred_check
    _
  $region27: #{_lambda_.2} parent=0 // pred_check_branch
    %67 = sbr.rel (0) target = $region29
  $region28: #{_lambda_.2} parent=0 // pred_region
    _
  $region29: #{_lambda_.2} parent=0 // pred_fallthru
    _
  // Predicated region
  $region30: #{_lambda_.2} parent=0 // pred_check
    _
  $region31: #{_lambda_.2} parent=0 // pred_check_branch
    %69 = sbr.rel (0) target = $region33
  $region32: #{_lambda_.2} parent=0 // pred_region
    _
  $region33: #{_lambda_.2} parent=0 // pred_fallthru
    _

// kernel: custom-call.2
$region0: #{custom-call.2}
  %s0 = inlined_call_operand.vmem [shape: f32[1,1,16,16], index: 0, kind: input, shape index: {}]
  %s1 = inlined_call_operand.vmem [shape: f32[1,1,16,16], index: 1, kind: input, shape index: {}]
  %s2 = inlined_call_operand.hbm [shape: c64[1,1,16,16], index: 2, kind: output, shape index: {}]
  %s3 = scalar_lea.hbm %s2, 256
  $region1: #{custom-call.2} parent=0
    #allocation0 [shape = 's32[1]{0}', space=sflag, size = 0x4, scoped, tag = 'scoped memory for custom-call.2']
    %4 = vsyncpa [#allocation0], 0
    %s5 = sshll.u32 %s0, 4
    %s6 = int_to_ptr.vmem [resolvable:$true] %s5
    %8 = dma.vmem_to_hbm [thread:$0]  %s6, 256, %s2, [#allocation0]
    %9 = dma.done [#allocation0], 256
    %10 = vsyncpa [#allocation0], 1
  $region2: #{custom-call.2} parent=0
    #allocation1 [shape = 's32[1]{0}', space=sflag, size = 0x4, scoped, tag = 'scoped memory for custom-call.2']
    %11 = vsyncpa [#allocation1], 0
    %s12 = sshll.u32 %s1, 4
    %s13 = int_to_ptr.vmem [resolvable:$true] %s12
    %15 = dma.vmem_to_hbm [thread:$0]  %s13, 256, %s3, [#allocation1]
    %16 = dma.done [#allocation1], 256
    %17 = vsyncpa [#allocation1], 1

// kernel: _lambda_.3
$region0: #{_lambda_.3}
  #allocation0 [shape = 'u32[]', space=smem, size = 0x4, offset = 0x4, fixed_abs, tag = 'smem constant byte address 0x4 - core index']
  #allocation1 [shape = 'u32[144,128]{1,0:T(1,128)}', space=vmem, size = 0x12000, scoped, tag = 'internal scratch']
  %s0 = inlined_call_operand.vmem [shape: f32[8,32], index: 0, kind: input, shape index: {}]
  %s1 = inlined_call_operand.vmem [shape: f32[8,32], index: 1, kind: input, shape index: {}]
  %s2 = inlined_call_operand.vmem [shape: f32[4,8,32], index: 2, kind: input, shape index: {}]
  %s3 = inlined_call_operand.vmem [shape: f32[4,8,32], index: 3, kind: input, shape index: {}]
  %s4 = inlined_call_operand.vmem [shape: f32[4,8,32], index: 4, kind: input, shape index: {}]
  %s5 = inlined_call_operand.vmem [shape: f32[4,8,32], index: 5, kind: input, shape index: {}]
  %s6 = inlined_call_operand.vmem [shape: f32[8,32], index: 6, kind: output, shape index: {0}]
  %s7 = inlined_call_operand.vmem [shape: f32[8,32], index: 7, kind: output, shape index: {1}]
  %8 = xla_tuple %s6, %s7
  %s9 = sld [smem:[#allocation0]]
  $region46: #{_lambda_.3} parent=0
    _
  %s11 = ssub.s32 1, %s9
  %s12 = scalar_select 0, %s11, %s9
  // Predicated region
  $region2: #{_lambda_.3} parent=0 // pred_check
    _
  $region3: #{_lambda_.3} parent=0 // pred_check_branch
    %14 = sbr.rel (0) target = $region5
  $region4: #{_lambda_.3} parent=0 // pred_region
    _
  $region5: #{_lambda_.3} parent=0 // pred_fallthru
    _
  // Predicated region
  $region6: #{_lambda_.3} parent=0 // pred_check
    _
  $region7: #{_lambda_.3} parent=0 // pred_check_branch
    %16 = sbr.rel (0) target = $region9
  $region8: #{_lambda_.3} parent=0 // pred_region
    _
  $region9: #{_lambda_.3} parent=0 // pred_fallthru
    _
  // Predicated region
  $region10: #{_lambda_.3} parent=0 // pred_check
    _
  $region11: #{_lambda_.3} parent=0 // pred_check_branch
    %18 = sbr.rel (0) target = $region13
  $region12: #{_lambda_.3} parent=0 // pred_region
    _
  $region13: #{_lambda_.3} parent=0 // pred_fallthru
    _
  // Predicated region
  $region14: #{_lambda_.3} parent=0 // pred_check
    _
  $region15: #{_lambda_.3} parent=0 // pred_check_branch
    %20 = sbr.rel (0) target = $region17
  $region16: #{_lambda_.3} parent=0 // pred_region
    _
  $region17: #{_lambda_.3} parent=0 // pred_fallthru
    _
  // Predicated region
  $region18: #{_lambda_.3} parent=0 // pred_check
    _
  $region19: #{_lambda_.3} parent=0 // pred_check_branch
    %22 = sbr.rel (0) target = $region21
  $region20: #{_lambda_.3} parent=0 // pred_region
    _
  $region21: #{_lambda_.3} parent=0 // pred_fallthru
    _
  // Predicated region
  $region22: #{_lambda_.3} parent=0 // pred_check
    _
  $region23: #{_lambda_.3} parent=0 // pred_check_branch
    %24 = sbr.rel (0) target = $region25
  $region24: #{_lambda_.3} parent=0 // pred_region
    _
  $region25: #{_lambda_.3} parent=0 // pred_fallthru
    _
  %p25 = scmp.eq.s32.totalorder 0, 0
  // Predicated region
  $region26: #{_lambda_.3} parent=0 // pred_check
    %p26 = pneg %p25
  $region27: #{_lambda_.3} parent=0 // pred_check_branch
    %28 = sbr.rel (%p26) target = $region29
  $region28: #{_lambda_.3} parent=0 // pred_region
    %v29 = vld [vmem:[%s0] sm:$0xff]
    %vm30 = vcmask 261120
    %31 = vst.msk [vmem:[%s6] sm:$0xff] %vm30, %v29
    %v32 = vld [vmem:[%s1] sm:$0xff]
    %33 = vst.msk [vmem:[%s7] sm:$0xff] %vm30, %v32
  $region29: #{_lambda_.3} parent=0 // pred_fallthru
    _
  %v34 = vld [vmem:[%s2] sm:$0xff]
  %v35 = vld [vmem:[%s2 + $0x8] sm:$0xff]
  %v36 = vld [vmem:[%s2 + $0x10] sm:$0xff]
  %v37 = vld [vmem:[%s2 + $0x18] sm:$0xff]
  %v38 = vld [vmem:[%s3] sm:$0xff]
  %v39 = vld [vmem:[%s3 + $0x8] sm:$0xff]
  %v40 = vld [vmem:[%s3 + $0x10] sm:$0xff]
  %v41 = vld [vmem:[%s3 + $0x18] sm:$0xff]
  %v42 = vld [vmem:[%s4] sm:$0xff]
  %v43 = vld [vmem:[%s4 + $0x8] sm:$0xff]
  %v44 = vld [vmem:[%s4 + $0x10] sm:$0xff]
  %v45 = vld [vmem:[%s4 + $0x18] sm:$0xff]
  %v46 = vld [vmem:[%s5] sm:$0xff]
  %v47 = vld [vmem:[%s5 + $0x8] sm:$0xff]
  %v48 = vld [vmem:[%s5 + $0x10] sm:$0xff]
  %v49 = vld [vmem:[%s5 + $0x18] sm:$0xff]
  %v50 = vld [vmem:[%s6] sm:$0xff]
  %v51 = vmul.f32 %v34, %v42
  %v52 = vmul.f32 %v35, %v43
  %v53 = vmul.f32 %v36, %v44
  %v54 = vmul.f32 %v37, %v45
  %v55 = vmul.f32 %v38, %v46
  %v56 = vmul.f32 %v39, %v47
  %v57 = vmul.f32 %v40, %v48
  %v58 = vmul.f32 %v41, %v49
  %v59 = vadd.f32 %v51, %v55
  %v60 = vadd.f32 %v52, %v56
  %v61 = vadd.f32 %v53, %v57
  %v62 = vadd.f32 %v54, %v58
  %vm63 = vcmask 261120
  %v64 = vsel %vm63, %v59, 0.0
  %v65 = vsel %vm63, %v60, 0.0
  %v66 = vadd.f32 %v64, %v65
  %v67 = vsel %vm63, %v61, 0.0
  %v68 = vadd.f32 %v66, %v67
  %v69 = vsel %vm63, %v62, 0.0
  %v70 = vadd.f32 %v68, %v69
  %v71 = vadd.f32 %v50, %v70
  %72 = vst.msk [vmem:[%s6] sm:$0xff] %vm63, %v71
  %v73 = vld [vmem:[%s7] sm:$0xff]
  %v74 = vmul.f32 %v34, %v46
  %v75 = vmul.f32 %v35, %v47
  %v76 = vmul.f32 %v36, %v48
  %v77 = vmul.f32 %v37, %v49
  %v78 = vmul.f32 %v38, %v42
  %v79 = vmul.f32 %v39, %v43
  %v80 = vmul.f32 %v40, %v44
  %v81 = vmul.f32 %v41, %v45
  %v82 = vsub.f32 %v74, %v78
  %v83 = vsub.f32 %v75, %v79
  %v84 = vsub.f32 %v76, %v80
  %v85 = vsub.f32 %v77, %v81
  %v86 = vsel %vm63, %v82, 0.0
  %v87 = vsel %vm63, %v83, 0.0
  %v88 = vadd.f32 %v86, %v87
  %v89 = vsel %vm63, %v84, 0.0
  %v90 = vadd.f32 %v88, %v89
  %v91 = vsel %vm63, %v85, 0.0
  %v92 = vadd.f32 %v90, %v91
  %v93 = vadd.f32 %v73, %v92
  %94 = vst.msk [vmem:[%s7] sm:$0xff] %vm63, %v93
  // Predicated region
  $region30: #{_lambda_.3} parent=0 // pred_check
    _
  $region31: #{_lambda_.3} parent=0 // pred_check_branch
    %96 = sbr.rel (0) target = $region33
  $region32: #{_lambda_.3} parent=0 // pred_region
    _
  $region33: #{_lambda_.3} parent=0 // pred_fallthru
    _
  // Predicated region
  $region34: #{_lambda_.3} parent=0 // pred_check
    _
  $region35: #{_lambda_.3} parent=0 // pred_check_branch
    %98 = sbr.rel (0) target = $region37
  $region36: #{_lambda_.3} parent=0 // pred_region
    _
  $region37: #{_lambda_.3} parent=0 // pred_fallthru
    _
  // Predicated region
  $region38: #{_lambda_.3} parent=0 // pred_check
    _
  $region39: #{_lambda_.3} parent=0 // pred_check_branch
    %100 = sbr.rel (0) target = $region41
  $region40: #{_lambda_.3} parent=0 // pred_region
    _
  $region41: #{_lambda_.3} parent=0 // pred_fallthru
    _
  // Predicated region
  $region42: #{_lambda_.3} parent=0 // pred_check
    _
  $region43: #{_lambda_.3} parent=0 // pred_check_branch
    %102 = sbr.rel (0) target = $region45
  $region44: #{_lambda_.3} parent=0 // pred_region
    _
  $region45: #{_lambda_.3} parent=0 // pred_fallthru
    _

</llo_original>
